<compile_context>
chip_gen: v7x
topology: tpu7x:2x2x1
jax: 0.10.0
libtpu: 0.0.40
codegen_flags: <defaults>
</compile_context>

<pallas_src>
import math
import functools

import jax
import jax.numpy as jnp
from jax import lax
from jax.experimental import pallas as pl
from jax.experimental.pallas import tpu as pltpu


# ---------------------------------------------------------------------------
# pe buffer construction (buffer setup == glue, stays in plain JAX)
# ---------------------------------------------------------------------------
def make_pe(d_model: int, max_len: int = 5000) -> jnp.ndarray:
    position = jnp.arange(max_len, dtype=jnp.float32)[:, None]            # [L, 1]
    div_term = jnp.exp(
        jnp.arange(0, d_model, 2, dtype=jnp.float32)
        * (-math.log(10000.0) / d_model)
    )                                                                     # [D/2]
    pe = jnp.zeros((max_len, d_model), dtype=jnp.float32)
    pe = pe.at[:, 0::2].set(jnp.sin(position * div_term))
    pe = pe.at[:, 1::2].set(jnp.cos(position * div_term))
    return pe                                                             # [L, D]


# ---------------------------------------------------------------------------
# In-kernel helpers
# ---------------------------------------------------------------------------
def _bcast_pe(pe, x_ndim, reps):
    """pe block is [tS, D]; expand it to the x block layout inside the kernel."""
    if x_ndim == 3:
        return pe[:, None, :]                          # broadcast over batch (sublane)
    if reps > 1:
        return jnp.concatenate([pe] * reps, axis=-1)   # [tS, B*D] lane tiling
    return pe


def _mix32(h):
    """Cheap xorshift-multiply mixer on int32 (wrapping); pure VPU ops."""
    h = h ^ jnp.right_shift(h, 16)
    h = h * 0x7FEB352D
    h = h ^ jnp.right_shift(h, 13)
    h = h * 0x3243F6A9
    h = h ^ jnp.right_shift(h, 16)
    return h


_AXIS_MULTS = (0x1B873593, 0x6C8E9CF5, 0x2545F491)     # odd, fit in int32


def _keep_mask(shape, seed, row_off, threshold):
    """Tiling-invariant Bernoulli(1-p) mask from global coordinates + seed."""
    h = lax.broadcasted_iota(jnp.int32, shape, 0) + row_off     # global row ids
    h = _mix32(h * 0x61C88647 + seed)
    for ax in range(1, len(shape)):
        c = lax.broadcasted_iota(jnp.int32, shape, ax)
        h = _mix32(h ^ (c * _AXIS_MULTS[(ax - 1) % len(_AXIS_MULTS)]))
    r = h & 0x7FFFFFFF                                          # uniform 31-bit
    return r >= threshold                                       # P(keep) = 1 - p


# ---------------------------------------------------------------------------
# Pallas kernels
# ---------------------------------------------------------------------------
def _pe_add_kernel(x_ref, pe_ref, o_ref, *, reps: int):
    x = x_ref[...]
    o_ref[...] = x + _bcast_pe(pe_ref[...], x.ndim, reps)


def _pe_add_dropout_kernel(seed_ref, x_ref, pe_ref, o_ref, *,
                           reps: int, p: float, tile_rows: int):
    x = x_ref[...]
    y = x + _bcast_pe(pe_ref[...], x.ndim, reps)
    row_off = pl.program_id(0) * tile_rows                      # global seq offset
    keep = _keep_mask(y.shape, seed_ref[0], row_off, int(p * (1 << 31)))
    scale = 1.0 / (1.0 - p)                                     # inverted dropout
    o_ref[...] = jnp.where(keep, y * scale, 0.0)


# ---------------------------------------------------------------------------
# Wrapper
# ---------------------------------------------------------------------------
def _sublane(dtype) -> int:
    # second-minor dim granularity: 8 for f32, 16 for bf16, 32 for int8/fp8
    return max(8, 32 // jnp.dtype(dtype).itemsize)


def _round_up(v: int, m: int) -> int:
    return (v + m - 1) // m * m


def _pick_tile_rows(n_rows: int, row_bytes: int, target_block_bytes: int,
                    sub: int) -> int:
    """Largest sublane-multiple row count within the byte budget, capped so the
    grid has >= 2 (ideally >= 4) steps (feeds both v7x TensorCores and keeps the
    DMA/compute pipeline busy; neutral on single-TC v5e/v6e)."""
    rows = max(sub, (target_block_bytes // max(row_bytes, 1)) // sub * sub)
    if n_rows >= 4 * sub:
        rows = min(rows, _round_up(-(-n_rows // 4), sub))
    elif n_rows >= 2 * sub:
        rows = min(rows, _round_up(-(-n_rows // 2), sub))
    return n_rows if rows >= n_rows else int(rows)


def positional_encoding_forward(x, pe, *, p: float = 0.1, training: bool = False,
                                seed: int = 0,
                                block_bytes: int = 4 * 1024 * 1024):
    """x: [S, B, D]; pe: [max_len, D] (as produced by make_pe)."""
    S, B, D = x.shape
    assert 0.0 <= p < 1.0, "dropout p must be in [0, 1)"
    assert S <= pe.shape[0], "seq_len exceeds positional-encoding max_len"
    pe_sl = pe[:S].astype(x.dtype)                              # == pe[:x.size(0)]

    itemsize = jnp.dtype(x.dtype).itemsize
    sub = _sublane(x.dtype)
    row_bytes = B * D * itemsize
    tS = _pick_tile_rows(S, row_bytes, block_bytes, sub)
    grid = (pl.cdiv(S, tS),)

    # 3-D layout only when both the sublane (B) and lane (D) dims are dense;
    # otherwise flatten [S,B,D] -> [S,B*D] (free, contiguous reshape) so lanes
    # stay dense and no 4x sublane padding happens at small batch.
    keep_3d = (D % 128 == 0) and (B % sub == 0)
    if keep_3d:
        x_in = x
        reps = 1
        x_spec   = pl.BlockSpec((tS, B, D), lambda s, *_: (s, 0, 0))
        out_spec = pl.BlockSpec((tS, B, D), lambda s, *_: (s, 0, 0))
        out_shape = jax.ShapeDtypeStruct((S, B, D), x.dtype)
    else:
        x_in = x.reshape(S, B * D)
        reps = B                                   # pe tiled in-kernel, not in HBM
        x_spec   = pl.BlockSpec((tS, B * D), lambda s, *_: (s, 0))
        out_spec = pl.BlockSpec((tS, B * D), lambda s, *_: (s, 0))
        out_shape = jax.ShapeDtypeStruct((S, B * D), x.dtype)
    # pe always streams as a small [tS, D] block (1/B of the x traffic).
    pe_spec = pl.BlockSpec((tS, D), lambda s, *_: (s, 0))

    # VMEM sanity: x in + out double-buffered, pe double-buffered.
    x_block_bytes = tS * row_bytes
    pe_block_bytes = tS * D * itemsize
    est_vmem = 2 * (2 * x_block_bytes + pe_block_bytes)
    # TODO(synk): for huge B*D (min tile over budget) add a 2nd grid axis splitting lanes.
    assert est_vmem <= 28 * 1024 * 1024, "tile too large for the 32 MiB VMEM budget"

    compiler_params = pltpu.CompilerParams(
        dimension_semantics=("parallel",),          # seq tiles independent -> megacore
        vmem_limit_bytes=32 * 1024 * 1024,          # safe on v5e/v6e/v7x
    )
    # NOTE: enable input_output_aliases (x -> out) in production when x is donated.

    if (not training) or p == 0.0:
        out = pl.pallas_call(
            functools.partial(_pe_add_kernel, reps=reps),
            out_shape=out_shape,
            grid_spec=pltpu.PrefetchScalarGridSpec(
                num_scalar_prefetch=0,
                grid=grid,
                in_specs=[x_spec, pe_spec],
                out_specs=out_spec,
            ),
            compiler_params=compiler_params,
        )(x_in, pe_sl)
    else:
        seed_arr = jnp.asarray([seed], dtype=jnp.int32)
        out = pl.pallas_call(
            functools.partial(_pe_add_dropout_kernel, reps=reps, p=p, tile_rows=tS),
            out_shape=out_shape,
            grid_spec=pltpu.PrefetchScalarGridSpec(
                num_scalar_prefetch=1,              # seed lives in SMEM
                grid=grid,
                in_specs=[x_spec, pe_spec],
                out_specs=out_spec,
            ),
            compiler_params=compiler_params,
        )(seed_arr, x_in, pe_sl)

    return out if keep_3d else out.reshape(S, B, D)


# ---------------------------------------------------------------------------
# Main
# ---------------------------------------------------------------------------
if __name__ == "__main__":
    # --- case 1: small d_model -> flattened lane-dense path, multi-step grid --
    d_model, max_len = 32, 512
    seq_len, batch = 64, 4

    key = jax.random.PRNGKey(0)
    x = jax.random.normal(key, (seq_len, batch, d_model), dtype=jnp.float32)
    pe = make_pe(d_model, max_len)
    ref = x + pe[:seq_len][:, None, :]

    # small block budget so the tiny demo still exercises a multi-step pipeline
    out = positional_encoding_forward(x, pe, p=0.1, training=False,
                                      block_bytes=8 * 1024)
    out = jax.block_until_ready(out)
    assert out.shape == x.shape
    assert jnp.allclose(out, ref, atol=1e-5), "eval-path mismatch vs reference"

    # training path: dropout(x + pe) with inverted scaling
    p = 0.1
    out_tr = positional_encoding_forward(x, pe, p=p, training=True, seed=123,
                                         block_bytes=4 * 1024)
    out_tr = jax.block_until_ready(out_tr)
    assert out_tr.shape == x.shape
    kept = out_tr != 0.0
    assert jnp.allclose(jnp.where(kept, out_tr, 0.0),
                        jnp.where(kept, ref / (1.0 - p), 0.0),
                        atol=1e-5), "kept values must equal (x+pe)/(1-p)"
    keep_frac = float(jnp.mean(kept.astype(jnp.float32)))
    assert 0.80 < keep_frac < 0.99, f"dropout keep fraction looks wrong: {keep_frac}"

    # dropout mask derives from global coords + seed -> invariant to tiling
    out_tr2 = positional_encoding_forward(x, pe, p=p, training=True, seed=123,
                                          block_bytes=64 * 1024)
    out_tr2 = jax.block_until_ready(out_tr2)
    assert jnp.array_equal(out_tr, out_tr2), "dropout mask must not depend on tiling"

    # --- case 2: D % 128 == 0 but B=2 -> still flattened (no sublane padding) --
    x2 = jax.random.normal(jax.random.PRNGKey(1), (20, 2, 128), dtype=jnp.float32)
    pe2 = make_pe(128, 64)
    out2 = positional_encoding_forward(x2, pe2, training=False,
                                       block_bytes=8 * 1024)
    out2 = jax.block_until_ready(out2)
    assert jnp.allclose(out2, x2 + pe2[:20][:, None, :], atol=1e-5), "case-2 mismatch"

    # --- case 3: B=8, D=128 -> 3-D path, pe broadcast over sublanes in-kernel --
    x3 = jax.random.normal(jax.random.PRNGKey(2), (24, 8, 128), dtype=jnp.float32)
    pe3 = make_pe(128, 64)
    out3 = positional_encoding_forward(x3, pe3, training=False,
                                       block_bytes=8 * 1024)
    out3 = jax.block_until_ready(out3)
    assert jnp.allclose(out3, x3 + pe3[:24][:, None, :], atol=1e-5), "case-3 mismatch"

    print("KERNEL_OK")
</pallas_src>

<mosaic_0001>
module attributes {stable_mosaic.version = 11 : i64} {
  func.func @_pe_add_kernel(%arg0: i32, %arg1: memref<16x128xf32, #tpu.memory_space<vmem>>, %arg2: memref<16x32xf32, #tpu.memory_space<vmem>>, %arg3: memref<16x128xf32, #tpu.memory_space<vmem>>) attributes {dimension_semantics = [#tpu.dimension_semantics<parallel>], iteration_bounds = array<i64: 4>, scalar_prefetch = 0 : i64, scratch_operands = 0 : i64, tpu.core_type = #tpu.core_type<tc>, window_params = [{transform_indices = @transform_0, window_bounds = array<i64: 16, 128>}, {transform_indices = @transform_1, window_bounds = array<i64: 16, 32>}, {transform_indices = @transform_2, window_bounds = array<i64: 16, 128>}]} {
    %c0 = arith.constant 0 : index
    %c0_0 = arith.constant 0 : index
    %0 = vector.load %arg1[%c0, %c0_0] : memref<16x128xf32, #tpu.memory_space<vmem>>, vector<16x128xf32>
    %c0_1 = arith.constant 0 : index
    %c0_2 = arith.constant 0 : index
    %1 = vector.load %arg2[%c0_1, %c0_2] : memref<16x32xf32, #tpu.memory_space<vmem>>, vector<16x32xf32>
    %2 = tpu.concatenate %1, %1, %1, %1 in 1 : vector<16x32xf32>, vector<16x32xf32>, vector<16x32xf32>, vector<16x32xf32> -> vector<16x128xf32>
    %3 = arith.addf %0, %2 : vector<16x128xf32>
    %c0_3 = arith.constant 0 : index
    %c0_4 = arith.constant 0 : index
    %4 = vector.load %arg3[%c0_3, %c0_4] : memref<16x128xf32, #tpu.memory_space<vmem>>, vector<16x128xf32>
    tpu.vector_store %arg3[%c0_3, %c0_4], %3 {strides = array<i32>} : memref<16x128xf32, #tpu.memory_space<vmem>>, vector<16x128xf32>,
    return
  }
  func.func @transform_0(%arg0: i32) -> (i32, i32) {
    %c0_i32 = arith.constant 0 : i32
    %c0_i32_0 = arith.constant 0 : i32
    return %arg0, %c0_i32 : i32, i32
  }
  func.func @transform_1(%arg0: i32) -> (i32, i32) {
    %c0_i32 = arith.constant 0 : i32
    %c0_i32_0 = arith.constant 0 : i32
    return %arg0, %c0_i32 : i32, i32
  }
  func.func @transform_2(%arg0: i32) -> (i32, i32) {
    %c0_i32 = arith.constant 0 : i32
    %c0_i32_0 = arith.constant 0 : i32
    return %arg0, %c0_i32 : i32, i32
  }
}

</mosaic_0001>

<llo_original>
// kernel: tpu_custom_call.1
$region0: #{tpu_custom_call.1}
  #allocation0 [shape = 'u32[]', space=smem, size = 0x4, offset = 0x4, fixed_abs, tag = 'smem constant byte address 0x4 - core index']
  #allocation1 [shape = 'u32[144,128]{1,0:T(1,128)}', space=vmem, size = 0x12000, scoped, tag = 'internal scratch']
  %s0 = inlined_call_operand.vmem [shape: f32[64,128], index: 0, kind: input, shape index: {}]
  %s1 = inlined_call_operand.vmem [shape: f32[64,32], index: 1, kind: input, shape index: {}]
  %s2 = inlined_call_operand.hbm [shape: f32[64,128], index: 2, kind: output, shape index: {}]
  %s3 = sld [smem:[#allocation0]]
  $region41: #{tpu_custom_call.1} parent=0
    _
  %s5 = ssub.s32 1, %s3
  %s6 = scalar_select 0, %s5, %s3
  $region1: #{tpu_custom_call.1} parent=0
    #allocation2 [shape = 'u8[16384]{0}', space=vmem, size = 0x4000, scoped, tag = 'output window, operand 0']
    #allocation3 [shape = 's32[2]{0}', space=sflag, size = 0x8, scoped, tag = 'scoped memory for tpu_custom_call.1']
    %7 = vsyncpa [#allocation3], 0
    %s8 = scalar_lea.sflag [#allocation3], 1
    %9 = vsyncpa %s8, 0
    loop: start=0, step=1, limit=6
    $region2: #{tpu_custom_call.1} parent=1 // loop_pre_header
      _
    $region3: #{tpu_custom_call.1} parent=1 // loop_header
      %s11 = sphi 0, %s15
      %p12 = scmp.ge.s32.totalorder %s11, 6
      %s21 = sphi 0, %s23
      %s24 = sphi 0, %s21
      %s25 = sphi 0, %s24
      %s41 = sphi 0, %s25
      %s47 = sphi 0, %s49
      %s50 = sphi 0, %s47
      %s51 = sphi 0, %s50
      %s67 = sphi 0, %s51
      %s73 = sphi 0, %s75
      %s76 = sphi 0, %s73
      %s77 = sphi 0, %s76
      %s93 = sphi 0, %s77
    $region4: #{tpu_custom_call.1} parent=1 // loop_header_branch
      %14 = sbr.rel (%p12) target = $region8
    $region5: #{tpu_custom_call.1} parent=1 // loop_body
      %s16 = ssub.s32 %s11, 1
      %s17 = ssub.s32 %s11, 2
      %s18 = sadd.s32 %s11, 1
      %s19 = ssub.s32 %s11, %s18
      %p20 = scmp.eq.s32.totalorder %s19, 0
      %s22 = sadd.s32 %s21, 1
      %s23 = scalar_select %p20, %s21, %s22
      %p26 = pneg %p20
      %p27 = scmp.eq.s32.totalorder %s11, 3
      %p28 = por %p26, %p27
      %p29 = scmp.ne.s32.totalorder %s21, %s24
      %p30 = scmp.eq.s32.totalorder %s11, 0
      %p31 = por %p29, %p30
      %p32 = scmp.ne.s32.totalorder %s21, %s24
      %p33 = scmp.eq.s32.totalorder %s16, 3
      %p34 = por %p32, %p33
      %p35 = scmp.ne.s32.totalorder %s24, %s25
      %p36 = scmp.eq.s32.totalorder %s16, 0
      %p37 = por %p35, %p36
      %p38 = scmp.ne.s32.totalorder %s24, %s25
      %p39 = scmp.eq.s32.totalorder %s17, 3
      %p40 = por %p38, %p39
      %p42 = scmp.ne.s32.totalorder %s25, %s41
      %p43 = scmp.eq.s32.totalorder %s17, 0
      %p44 = por %p42, %p43
      %s45 = ssub.s32 %s11, %s18
      %p46 = scmp.eq.s32.totalorder %s45, 0
      %s48 = sadd.s32 %s47, 1
      %s49 = scalar_select %p46, %s47, %s48
      %p52 = pneg %p46
      %p53 = scmp.eq.s32.totalorder %s11, 3
      %p54 = por %p52, %p53
      %p55 = scmp.ne.s32.totalorder %s47, %s50
      %p56 = scmp.eq.s32.totalorder %s11, 0
      %p57 = por %p55, %p56
      %p58 = scmp.ne.s32.totalorder %s47, %s50
      %p59 = scmp.eq.s32.totalorder %s16, 3
      %p60 = por %p58, %p59
      %p61 = scmp.ne.s32.totalorder %s50, %s51
      %p62 = scmp.eq.s32.totalorder %s16, 0
      %p63 = por %p61, %p62
      %p64 = scmp.ne.s32.totalorder %s50, %s51
      %p65 = scmp.eq.s32.totalorder %s17, 3
      %p66 = por %p64, %p65
      %p68 = scmp.ne.s32.totalorder %s51, %s67
      %p69 = scmp.eq.s32.totalorder %s17, 0
      %p70 = por %p68, %p69
      %s71 = ssub.s32 %s11, %s18
      %p72 = scmp.eq.s32.totalorder %s71, 0
      %s74 = sadd.s32 %s73, 1
      %s75 = scalar_select %p72, %s73, %s74
      %p78 = pneg %p72
      %p79 = scmp.eq.s32.totalorder %s11, 3
      %p80 = por %p78, %p79
      %p81 = scmp.ne.s32.totalorder %s73, %s76
      %p82 = scmp.eq.s32.totalorder %s11, 0
      %p83 = por %p81, %p82
      %p84 = scmp.ne.s32.totalorder %s73, %s76
      %p85 = scmp.eq.s32.totalorder %s16, 3
      %p86 = por %p84, %p85
      %p87 = scmp.ne.s32.totalorder %s76, %s77
      %p88 = scmp.eq.s32.totalorder %s16, 0
      %p89 = por %p87, %p88
      %p90 = scmp.ne.s32.totalorder %s76, %s77
      %p91 = scmp.eq.s32.totalorder %s17, 3
      %p92 = por %p90, %p91
      %p94 = scmp.ne.s32.totalorder %s77, %s93
      %p95 = scmp.eq.s32.totalorder %s17, 0
      %p96 = por %p94, %p95
      %p97 = scmp.le.s32.totalorder 1, %s11
      %p98 = scmp.lt.s32.totalorder %s11, 5
      %p99 = pnand %p97, %p98
      %p100 = pneg %p99
      // Predicated region
      $region9: #{tpu_custom_call.1} parent=5 // pred_check
        _
      $region10: #{tpu_custom_call.1} parent=5 // pred_check_branch
        %102 = sbr.rel (%p99) target = $region12
      $region11: #{tpu_custom_call.1} parent=5 // pred_region
        %s103 = ssub.s32 %s11, 1
      $region12: #{tpu_custom_call.1} parent=5 // pred_fallthru
        _
      %p104 = scmp.lt.s32.totalorder %s11, 4
      // Predicated region
      $region13: #{tpu_custom_call.1} parent=5 // pred_check
        %p105 = pneg %p104
      $region14: #{tpu_custom_call.1} parent=5 // pred_check_branch
        %107 = sbr.rel (%p105) target = $region16
      $region15: #{tpu_custom_call.1} parent=5 // pred_region
        // Predicated region
        $region17: #{tpu_custom_call.1} parent=15 // pred_check
          %p108 = pneg %p31
        $region18: #{tpu_custom_call.1} parent=15 // pred_check_branch
          %110 = sbr.rel (%p108) target = $region20
        $region19: #{tpu_custom_call.1} parent=15 // pred_region
          %s111 = smul.u32 2, %s11
          %p112 = scmp.lt.s32.totalorder %s111, 7
          %s113 = scalar_select %p112, %s111, 7
          %s114 = smul.addr %s113, 8
          %s115 = scalar_lea.vmem %s0, %s114
          %s116 = smul.u32 2, %s11
        $region20: #{tpu_custom_call.1} parent=15 // pred_fallthru
          _
        // Predicated region
        $region21: #{tpu_custom_call.1} parent=15 // pred_check
          %p117 = pneg %p57
        $region22: #{tpu_custom_call.1} parent=15 // pred_check_branch
          %119 = sbr.rel (%p117) target = $region24
        $region23: #{tpu_custom_call.1} parent=15 // pred_region
          %s120 = smul.u32 2, %s11
          %p121 = scmp.lt.s32.totalorder %s120, 7
          %s122 = scalar_select %p121, %s120, 7
          %s123 = smul.addr %s122, 8
          %s124 = scalar_lea.vmem %s1, %s123
          %s125 = smul.u32 2, %s11
        $region24: #{tpu_custom_call.1} parent=15 // pred_fallthru
          _
      $region16: #{tpu_custom_call.1} parent=5 // pred_fallthru
        _
      %p126 = scmp.le.s32.totalorder 1, %s11
      %p127 = scmp.lt.s32.totalorder %s11, 5
      %p128 = pnand %p126, %p127
      %p129 = pneg %p128
      // Predicated region
      $region25: #{tpu_custom_call.1} parent=5 // pred_check
        _
      $region26: #{tpu_custom_call.1} parent=5 // pred_check_branch
        %131 = sbr.rel (%p128) target = $region28
      $region27: #{tpu_custom_call.1} parent=5 // pred_region
        %s132 = ssub.s32 %s11, 1
        %s133 = smul.u32 2, %s16
        %p134 = scmp.lt.s32.totalorder %s133, 7
        %s135 = scalar_select %p134, %s133, 7
        %s136 = smul.addr %s135, 8
        %s137 = scalar_lea.vmem %s0, %s136
        %p138 = pneg %p37
        %p139 = pneg %p34
        %s140 = smul.u32 2, %s16
        %p141 = scmp.lt.s32.totalorder %s140, 7
        %s142 = scalar_select %p141, %s140, 7
        %s143 = smul.addr %s142, 8
        %s144 = scalar_lea.vmem %s1, %s143
        %p145 = pneg %p63
        %p146 = pneg %p60
        %p147 = pneg %p89
        %p148 = pneg %p86
        %s149 = sand.u32 %s76, 1
        %s150 = scalar_lea.sflag [#allocation3], %s149
        %s151 = sand.u32 %s76, 1
        %s152 = smul.addr %s151, 16
        %s153 = scalar_lea.vmem [#allocation2], %s152
        %s154 = smul.u32 2, %s16
        %p155 = scmp.lt.s32.totalorder %s154, 7
        %s156 = scalar_select %p155, %s154, 7
        %s157 = smul.addr %s156, 8
        %s158 = scalar_lea.vmem %s0, %s157
        %s159 = smul.u32 2, %s16
        %s160 = smul.u32 2, %s16
        %p161 = scmp.lt.s32.totalorder %s160, 7
        %s162 = scalar_select %p161, %s160, 7
        %s163 = smul.addr %s162, 8
        %s164 = scalar_lea.vmem %s1, %s163
        %s165 = smul.u32 2, %s16
        %s166 = smul.u32 2, %s16
        %v167 = vld [vmem:[%s158] sm:$0xff]
        %v168 = vld [vmem:[%s158 + $0x8] sm:$0xff]
        %v169 = vld [vmem:[%s164] sm:$0xff]
        %v170 = vld [vmem:[%s164 + $0x8] sm:$0xff]
        %173 = vrot.lane.b32.xlu0 %v169, 32
        %v174 = vpop.permute.xlu0 %173
        %175 = vrot.lane.b32.xlu0 %v170, 32
        %v176 = vpop.permute.xlu0 %175
        %179 = vrot.lane.b32.xlu0 %v169, 64
        %v180 = vpop.permute.xlu0 %179
        %181 = vrot.lane.b32.xlu0 %v170, 64
        %v182 = vpop.permute.xlu0 %181
        %185 = vrot.lane.b32.xlu0 %v169, 96
        %v186 = vpop.permute.xlu0 %185
        %187 = vrot.lane.b32.xlu0 %v170, 96
        %v188 = vpop.permute.xlu0 %187
        %vm191 = vcmask 261120
        %v192 = vsel %vm191, %v169, %v174
        %v193 = vsel %vm191, %v170, %v176
        %vm194 = vcmask 523264
        %v195 = vsel %vm194, %v192, %v180
        %v196 = vsel %vm194, %v193, %v182
        %vm197 = vcmask 785408
        %v198 = vsel %vm197, %v195, %v186
        %v199 = vsel %vm197, %v196, %v188
        %v200 = vadd.f32 %v167, %v198
        %v201 = vadd.f32 %v168, %v199
        %202 = vst [vmem:[%s153] sm:$0xff] %v200
        %203 = vst [vmem:[%s153 + $0x8] sm:$0xff] %v201
        %s204 = sand.u32 %s76, 1
        %s205 = scalar_lea.sflag [#allocation3], %s204
        %s206 = sand.u32 %s76, 1
        %s207 = smul.addr %s206, 16
        %s208 = scalar_lea.vmem [#allocation2], %s207
        // Predicated region
        $region29: #{tpu_custom_call.1} parent=27 // pred_check
          %p209 = pneg %p86
        $region30: #{tpu_custom_call.1} parent=27 // pred_check_branch
          %211 = sbr.rel (%p209) target = $region32
        $region31: #{tpu_custom_call.1} parent=27 // pred_region
          %s212 = smul.u32 2, %s16
          %s214 = ssub.s32 256, 256
          %215 = vsyncadd %s205, %s214
          %s216 = smul.addr %s212, 128
          %s217 = scalar_lea.hbm %s2, %s216
          %s218 = sshll.u32 %s208, 4
          %s219 = int_to_ptr.vmem [resolvable:$true] %s218
          %224 = dma.vmem_to_hbm [thread:$0]  %s219, 256, %s217, %s205, 128, 128, 8
        $region32: #{tpu_custom_call.1} parent=27 // pred_fallthru
          _
      $region28: #{tpu_custom_call.1} parent=5 // pred_fallthru
        _
      %p225 = scmp.le.s32.totalorder 2, %s11
      // Predicated region
      $region33: #{tpu_custom_call.1} parent=5 // pred_check
        %p226 = pneg %p225
      $region34: #{tpu_custom_call.1} parent=5 // pred_check_branch
        %228 = sbr.rel (%p226) target = $region36
      $region35: #{tpu_custom_call.1} parent=5 // pred_region
        %s229 = ssub.s32 %s11, 2
        // Predicated region
        $region37: #{tpu_custom_call.1} parent=35 // pred_check
          %p230 = pneg %p92
        $region38: #{tpu_custom_call.1} parent=35 // pred_check_branch
          %232 = sbr.rel (%p230) target = $region40
        $region39: #{tpu_custom_call.1} parent=35 // pred_region
          %s233 = sand.u32 %s77, 1
          %s234 = scalar_lea.sflag [#allocation3], %s233
          %s235 = sand.u32 %s77, 1
          %s236 = smul.addr %s235, 16
          %s237 = scalar_lea.vmem [#allocation2], %s236
          %238 = dma.done %s234, 256
        $region40: #{tpu_custom_call.1} parent=35 // pred_fallthru
          _
      $region36: #{tpu_custom_call.1} parent=5 // pred_fallthru
        _
    $region6: #{tpu_custom_call.1} parent=1 // loop_footer
      %s15 = sadd.s32 1, %s11
    $region7: #{tpu_custom_call.1} parent=1 // loop_footer_branch
      %10 = sbr.rel target = $region3
    $region8: #{tpu_custom_call.1} parent=1 // loop_exit
      _
    %239 = vsyncpa [#allocation3], 1
    %s240 = scalar_lea.sflag [#allocation3], 1
    %241 = vsyncpa %s240, 1

</llo_original>
